<compile_context>
chip_gen: v5e
topology: v5e:2x2
jax: 0.10.0
libtpu: 0.0.40
codegen_flags: <defaults>
</compile_context>

<pallas_src>
import functools

import jax
import jax.numpy as jnp
from jax.experimental import pallas as pl
from jax.experimental.pallas import tpu as pltpu


def _attn_kernel(enc_ref, hid_ref, out_ref):
    """enc_ref: (S, TB, H) slab in natural HBM layout; hid_ref: full (Bp, H),
    resident across the grid; out_ref: (TB, S) lane-dense block of (Bp, S)."""
    tb, _ = out_ref.shape

    # Rows of hid owned by this grid step (hid block index is constant, so the
    # whole (Bp, H) table is DMA'd once and sliced here).
    b0 = pl.multiple_of(pl.program_id(0) * tb, tb)
    hid = hid_ref[pl.ds(b0, tb), :].astype(jnp.float32)        # (TB, H)

    enc = enc_ref[...].astype(jnp.float32)                     # (S, TB, H)

    # Attention energies: contract H (lane axis) per (s, b) pair.
    #   scores_sb[s, b] = sum_h enc[s, b, h] * hid[b, h]
    scores_sb = jnp.sum(enc * hid[None, :, :], axis=-1)        # (S, TB)
    scores = scores_sb.T                                       # (TB, S) tiny 2-D transpose

    # Numerically stable softmax over the sequence axis (lanes).
    m = jnp.max(scores, axis=-1, keepdims=True)
    e = jnp.exp(scores - m)
    denom = jnp.sum(e, axis=-1, keepdims=True)
    probs = e * pl.reciprocal(denom, approx=True)              # EUP vrcp

    out_ref[...] = probs.astype(out_ref.dtype)


def _pick_batch_tile(S, B, H, itemsize, target_tile_bytes):
    """Batch rows per grid step: full B when the whole problem fits one block,
    otherwise a multiple of 8 sized for a ~target_tile_bytes enc tile (preferring
    a divisor of B so no padding and so B/TB >= 2 keeps both v7x cores busy)."""
    if B <= 8 or S * B * H * itemsize <= target_tile_bytes:
        return B
    rows = max(8, target_tile_bytes // (S * H * itemsize))
    rows = max(8, (min(B, rows) // 8) * 8)
    for tb in range(rows, 7, -8):          # prefer a divisor of B
        if B % tb == 0:
            return tb
    return rows


@functools.partial(jax.jit, static_argnames=("target_tile_bytes",))
def attn_forward(hidden, encoder_outputs, *, target_tile_bytes=2 * 1024 * 1024):
    """hidden: (1, B, H), encoder_outputs: (S, B, H) -> (B, 1, S) attention weights."""
    S, B, H = encoder_outputs.shape
    assert hidden.shape == (1, B, H)

    hid = hidden[0]                                   # (B, H): pure squeeze, no copy

    itemsize = jnp.dtype(encoder_outputs.dtype).itemsize
    TB = _pick_batch_tile(S, B, H, itemsize, target_tile_bytes)
    num_tiles = pl.cdiv(B, TB)
    Bp = num_tiles * TB

    if Bp != B:
        # Pad batch so every block is full; padded rows are sliced off at the end.
        encoder_outputs = jnp.pad(encoder_outputs, ((0, 0), (0, Bp - B), (0, 0)))
        hid = jnp.pad(hid, ((0, Bp - B), (0, 0)))

    grid_spec = pltpu.PrefetchScalarGridSpec(
        num_scalar_prefetch=0,
        grid=(num_tiles,),
        in_specs=[
            # enc read directly in its natural (S, B, H) layout — no transpose pass.
            pl.BlockSpec((S, TB, H), lambda b: (0, b, 0)),
            # hid is tiny: keep the whole table resident (constant block index).
            pl.BlockSpec((Bp, H), lambda b: (0, 0)),
        ],
        out_specs=pl.BlockSpec((TB, S), lambda b: (b, 0)),
    )

    probs = pl.pallas_call(
        _attn_kernel,
        out_shape=jax.ShapeDtypeStruct((Bp, S), jnp.float32),
        grid_spec=grid_spec,
        compiler_params=pltpu.CompilerParams(
            dimension_semantics=("parallel",),
        ),
    )(encoder_outputs, hid)

    return probs[:B, None, :]                          # (B, 1, S)


if __name__ == "__main__":
    # Small shapes consistent with the module: seq=8, batch=2, hidden=32.
    S, B, H = 8, 2, 32
    key = jax.random.PRNGKey(0)
    k1, k2 = jax.random.split(key)
    hidden = jax.random.normal(k1, (1, B, H), dtype=jnp.float32)
    encoder_outputs = jax.random.normal(k2, (S, B, H), dtype=jnp.float32)

    out = attn_forward(hidden, encoder_outputs)
    out = jax.block_until_ready(out)

    # Reference (mirrors the PyTorch forward exactly).
    enc_t = jnp.transpose(encoder_outputs, (1, 0, 2))          # (B, S, H)
    hid_t = jnp.transpose(hidden, (1, 2, 0))                   # (B, H, 1)
    energies = jnp.squeeze(jnp.matmul(enc_t, hid_t), axis=2)   # (B, S)
    ref = jax.nn.softmax(energies, axis=1)[:, None, :]         # (B, 1, S)

    assert out.shape == (B, 1, S)
    # Tolerance loosened slightly vs. 1e-5 because of the approximate (EUP)
    # reciprocal used for the softmax normalization (~1e-3 relative effect).
    assert jnp.allclose(out, ref, atol=2e-3, rtol=2e-3)
    assert jnp.allclose(jnp.sum(out, axis=-1), 1.0, atol=2e-3)

    print("KERNEL_OK")
</pallas_src>

<mosaic_0001>
module attributes {stable_mosaic.version = 11 : i64} {
  func.func @_attn_kernel(%arg0: i32, %arg1: memref<8x2x32xf32, #tpu.memory_space<vmem>>, %arg2: memref<2x32xf32, #tpu.memory_space<vmem>>, %arg3: memref<2x8xf32, #tpu.memory_space<vmem>>) attributes {dimension_semantics = [#tpu.dimension_semantics<parallel>], iteration_bounds = array<i64: 1>, scalar_prefetch = 0 : i64, scratch_operands = 0 : i64, tpu.core_type = #tpu.core_type<tc>, window_params = [{transform_indices = @transform_0, window_bounds = array<i64: 8, 2, 32>}, {pipeline_mode = #tpu.pipeline_mode<synchronous>, transform_indices = @transform_1, window_bounds = array<i64: 2, 32>}, {transform_indices = @transform_2, window_bounds = array<i64: 2, 8>}]} {
    %c2_i32 = arith.constant 2 : i32
    %0 = arith.muli %arg0, %c2_i32 : i32
    %1 = tpu.assume_multiple %0, 2 : i32
    %2 = arith.index_cast %1 : i32 to index
    %c0 = arith.constant 0 : index
    %3 = vector.load %arg2[%2, %c0] : memref<2x32xf32, #tpu.memory_space<vmem>>, vector<2x32xf32>
    %c0_0 = arith.constant 0 : index
    %c0_1 = arith.constant 0 : index
    %c0_2 = arith.constant 0 : index
    %4 = vector.load %arg1[%c0_0, %c0_1, %c0_2] : memref<8x2x32xf32, #tpu.memory_space<vmem>>, vector<8x2x32xf32>
    %5 = vector.shape_cast %3 : vector<2x32xf32> to vector<1x2x32xf32>
    %6 = vector.broadcast %5 : vector<1x2x32xf32> to vector<8x2x32xf32>
    %7 = arith.mulf %4, %6 : vector<8x2x32xf32>
    %cst = arith.constant dense<0.000000e+00> : vector<8x2xf32>
    %8 = vector.multi_reduction <add>, %7, %cst [2] : vector<8x2x32xf32> to vector<8x2xf32>
    %9 = tpu.transpose %8, [1, 0] : vector<8x2xf32> -> vector<2x8xf32>
    %cst_3 = arith.constant dense<0xFF800000> : vector<2xf32>
    %10 = vector.multi_reduction <maximumf>, %9, %cst_3 [1] : vector<2x8xf32> to vector<2xf32>
    %11 = vector.shape_cast %10 : vector<2xf32> to vector<2x1xf32>
    %12 = vector.broadcast %11 : vector<2x1xf32> to vector<2x8xf32>
    %13 = arith.subf %9, %12 : vector<2x8xf32>
    %14 = math.exp %13 : vector<2x8xf32>
    %cst_4 = arith.constant dense<0.000000e+00> : vector<2xf32>
    %15 = vector.multi_reduction <add>, %14, %cst_4 [1] : vector<2x8xf32> to vector<2xf32>
    %16 = vector.shape_cast %15 : vector<2xf32> to vector<2x1xf32>
    %17 = tpu.reciprocal %16 {approx = true} : vector<2x1xf32> -> vector<2x1xf32>
    %18 = vector.broadcast %17 : vector<2x1xf32> to vector<2x8xf32>
    %19 = arith.mulf %14, %18 : vector<2x8xf32>
    %c0_5 = arith.constant 0 : index
    %c0_6 = arith.constant 0 : index
    %20 = vector.load %arg3[%c0_5, %c0_6] : memref<2x8xf32, #tpu.memory_space<vmem>>, vector<2x8xf32>
    tpu.vector_store %arg3[%c0_5, %c0_6], %19 {strides = array<i32>} : memref<2x8xf32, #tpu.memory_space<vmem>>, vector<2x8xf32>,
    return
  }
  func.func @transform_0(%arg0: i32) -> (i32, i32, i32) {
    %c0_i32 = arith.constant 0 : i32
    %c0_i32_0 = arith.constant 0 : i32
    %c0_i32_1 = arith.constant 0 : i32
    return %c0_i32, %arg0, %c0_i32_0 : i32, i32, i32
  }
  func.func @transform_1(%arg0: i32) -> (i32, i32) {
    %c0_i32 = arith.constant 0 : i32
    %c0_i32_0 = arith.constant 0 : i32
    %c0_i32_1 = arith.constant 0 : i32
    return %c0_i32, %c0_i32_0 : i32, i32
  }
  func.func @transform_2(%arg0: i32) -> (i32, i32) {
    %c0_i32 = arith.constant 0 : i32
    %c0_i32_0 = arith.constant 0 : i32
    return %arg0, %c0_i32 : i32, i32
  }
}

</mosaic_0001>

<llo_original>
// kernel: attn_forward.1
$region0: #{attn_forward.1}
  #allocation0 [shape = 'u32[]', space=smem, size = 0x4, offset = 0x4, fixed_abs, tag = 'smem constant byte address 0x4 - core index']
  #allocation1 [shape = 'u32[72,128]{1,0:T(1,128)}', space=vmem, size = 0x9000, scoped, tag = 'internal scratch']
  %s0 = inlined_call_operand.hbm [shape: f32[8,2,32], index: 0, kind: input, shape index: {}]
  %s1 = inlined_call_operand.hbm [shape: f32[2,32], index: 1, kind: input, shape index: {}]
  %s2 = inlined_call_operand.hbm [shape: f32[2,8], index: 2, kind: output, shape index: {}]
  %s3 = sld [smem:[#allocation0]]
  $region26: #{attn_forward.1} parent=0
    _
  %s5 = ssub.s32 1, %s3
  %s6 = scalar_select 0, %s5, %s3
  $region1: #{attn_forward.1} parent=0
    #allocation2 [shape = 'u8[8192]{0}', space=vmem, size = 0x2000, scoped, tag = 'input window, operand 0, single buffered']
    #allocation3 [shape = 's32[1]{0}', space=sflag, size = 0x4, scoped, tag = 'scoped memory for attn_forward.1']
    #allocation4 [shape = 's32[1]{0}', space=sflag, size = 0x4, scoped, tag = 'scoped memory for attn_forward.1']
    #allocation5 [shape = 'u8[1024]{0}', space=vmem, size = 0x400, scoped, tag = 'input window, operand 1, single buffered']
    #allocation6 [shape = 's32[1]{0}', space=sflag, size = 0x4, scoped, tag = 'scoped memory for attn_forward.1']
    #allocation7 [shape = 'u8[1024]{0}', space=vmem, size = 0x400, scoped, tag = 'output window, operand 0, single buffered']
    %7 = vsyncpa [#allocation3], 0
    %8 = vsyncpa [#allocation6], 0
    %9 = vsyncpa [#allocation4], 0
    // Predicated region
    $region2: #{attn_forward.1} parent=1 // pred_check
      _
    $region3: #{attn_forward.1} parent=1 // pred_check_branch
      %11 = sbr.rel (0) target = $region5
    $region4: #{attn_forward.1} parent=1 // pred_region
      %13 = vsyncadd [#allocation3], 0
      %s14 = sshll.u32 %s0, 4
      %s15 = int_to_ptr.hbm [resolvable:$true] %s14
      %s16 = sshll.u32 [#allocation2], 4
      %s17 = int_to_ptr.vmem [resolvable:$true] %s16
      %22 = dma.hbm_to_vmem [thread:$0]  %s15, 256, %s17, [#allocation3], 32, 32, 2
    $region5: #{attn_forward.1} parent=1 // pred_fallthru
      _
    // Predicated region
    $region6: #{attn_forward.1} parent=1 // pred_check
      _
    $region7: #{attn_forward.1} parent=1 // pred_check_branch
      %24 = sbr.rel (0) target = $region9
    $region8: #{attn_forward.1} parent=1 // pred_region
      %26 = vsyncadd [#allocation6], 0
      %s28 = sshll.u32 %s1, 4
      %s29 = int_to_ptr.hbm [resolvable:$true] %s28
      %s30 = sshll.u32 [#allocation5], 4
      %s31 = int_to_ptr.vmem [resolvable:$true] %s30
      %33 = dma.hbm_to_vmem [thread:$0]  %s29, 32, %s31, [#allocation6]
    $region9: #{attn_forward.1} parent=1 // pred_fallthru
      _
    // Predicated region
    $region10: #{attn_forward.1} parent=1 // pred_check
      _
    $region11: #{attn_forward.1} parent=1 // pred_check_branch
      %35 = sbr.rel (0) target = $region13
    $region12: #{attn_forward.1} parent=1 // pred_region
      %37 = dma.done [#allocation3], 256
    $region13: #{attn_forward.1} parent=1 // pred_fallthru
      _
    // Predicated region
    $region14: #{attn_forward.1} parent=1 // pred_check
      _
    $region15: #{attn_forward.1} parent=1 // pred_check_branch
      %39 = sbr.rel (0) target = $region17
    $region16: #{attn_forward.1} parent=1 // pred_region
      %41 = dma.done [#allocation6], 32
    $region17: #{attn_forward.1} parent=1 // pred_fallthru
      _
    %s42 = smul.u32 0, 2
    %s43 = scalar_lea.vmem [#allocation5], %s42
    %v44 = vld [vmem:[%s43] sm:$0x3]
    %v45 = vld [vmem:[#allocation2] sm:$0x3]
    %v46 = vld [vmem:[#allocation2 + $0x2] sm:$0x3]
    %v47 = vld [vmem:[#allocation2 + $0x4] sm:$0x3]
    %v48 = vld [vmem:[#allocation2 + $0x6] sm:$0x3]
    %v49 = vld [vmem:[#allocation2 + $0x8] sm:$0x3]
    %v50 = vld [vmem:[#allocation2 + $0xa] sm:$0x3]
    %v51 = vld [vmem:[#allocation2 + $0xc] sm:$0x3]
    %v52 = vld [vmem:[#allocation2 + $0xe] sm:$0x3]
    %v53 = vmul.f32 %v45, %v44
    %v54 = vmul.f32 %v46, %v44
    %v55 = vmul.f32 %v47, %v44
    %v56 = vmul.f32 %v48, %v44
    %v57 = vmul.f32 %v49, %v44
    %v58 = vmul.f32 %v50, %v44
    %v59 = vmul.f32 %v51, %v44
    %v60 = vmul.f32 %v52, %v44
    %vm61 = vcmask 254976
    %v62 = vsel %vm61, %v53, 0.0
    %63 = vadd.xlane.f32.xlu0 %v62
    %v64 = vpop.xlane.xlu0 %63
    %v65 = vsel %vm61, %v54, 0.0
    %66 = vadd.xlane.f32.xlu0 %v65
    %v67 = vpop.xlane.xlu0 %66
    %v68 = vsel %vm61, %v55, 0.0
    %69 = vadd.xlane.f32.xlu0 %v68
    %v70 = vpop.xlane.xlu0 %69
    %v71 = vsel %vm61, %v56, 0.0
    %72 = vadd.xlane.f32.xlu0 %v71
    %v73 = vpop.xlane.xlu0 %72
    %v74 = vsel %vm61, %v57, 0.0
    %75 = vadd.xlane.f32.xlu0 %v74
    %v76 = vpop.xlane.xlu0 %75
    %v77 = vsel %vm61, %v58, 0.0
    %78 = vadd.xlane.f32.xlu0 %v77
    %v79 = vpop.xlane.xlu0 %78
    %v80 = vsel %vm61, %v59, 0.0
    %81 = vadd.xlane.f32.xlu0 %v80
    %v82 = vpop.xlane.xlu0 %81
    %v83 = vsel %vm61, %v60, 0.0
    %84 = vadd.xlane.f32.xlu0 %v83
    %v85 = vpop.xlane.xlu0 %84
    %v94 = vlaneseq
    %v95 = vand.u32 %v94, 127
    %v96 = vperm.slane %v64, %v95
    %v97 = vperm.slane %v67, %v95
    %v98 = vperm.slane %v70, %v95
    %v99 = vperm.slane %v73, %v95
    %v100 = vperm.slane %v76, %v95
    %v101 = vperm.slane %v79, %v95
    %v102 = vperm.slane %v82, %v95
    %v103 = vperm.slane %v85, %v95
    %vm104 = vcmask 1041409
    %v105 = vsel %vm104, %v97, %v96
    %vm106 = vcmask 1042434
    %v107 = vsel %vm106, %v98, %v105
    %vm108 = vcmask 1043459
    %v109 = vsel %vm108, %v99, %v107
    %vm110 = vcmask 1044484
    %v111 = vsel %vm110, %v100, %v109
    %vm112 = vcmask 1045509
    %v113 = vsel %vm112, %v101, %v111
    %vm114 = vcmask 1046534
    %v115 = vsel %vm114, %v102, %v113
    %vm116 = vcmask 1047559
    %v117 = vsel %vm116, %v103, %v115
    %119 = vxpose.xlu0.b32.start [1/16] %v117, 128
    %120 = vxpose.xlu0.b32.cont [2/16] 0.0, 128
    %121 = vxpose.xlu0.b32.cont [3/16] 0.0, 128
    %122 = vxpose.xlu0.b32.cont [4/16] 0.0, 128
    %123 = vxpose.xlu0.b32.cont [5/16] 0.0, 128
    %124 = vxpose.xlu0.b32.cont [6/16] 0.0, 128
    %125 = vxpose.xlu0.b32.cont [7/16] 0.0, 128
    %126 = vxpose.xlu0.b32.cont [8/16] 0.0, 128
    %127 = vxpose.xlu0.b32.cont [9/16] 0.0, 128
    %128 = vxpose.xlu0.b32.cont [10/16] 0.0, 128
    %129 = vxpose.xlu0.b32.cont [11/16] 0.0, 128
    %130 = vxpose.xlu0.b32.cont [12/16] 0.0, 128
    %131 = vxpose.xlu0.b32.cont [13/16] 0.0, 128
    %132 = vxpose.xlu0.b32.cont [14/16] 0.0, 128
    %133 = vxpose.xlu0.b32.cont [15/16] 0.0, 128
    %134 = vxpose.xlu0.b32.end [16/16] 0.0, 128
    %v135 = vpop.trf.xlu0
    %v136 = vpop.trf.xlu0
    %v137 = vpop.trf.xlu0
    %v138 = vpop.trf.xlu0
    %v139 = vpop.trf.xlu0
    %v140 = vpop.trf.xlu0
    %v141 = vpop.trf.xlu0
    %v142 = vpop.trf.xlu0
    %v143 = vpop.trf.xlu0
    %v144 = vpop.trf.xlu0
    %v145 = vpop.trf.xlu0
    %v146 = vpop.trf.xlu0
    %v147 = vpop.trf.xlu0
    %v148 = vpop.trf.xlu0
    %v149 = vpop.trf.xlu0
    %v150 = vpop.trf.xlu0
    %vm151 = vcmask 58368
    %v152 = vsel %vm151, %v135, -inf
    %153 = vmax.xlane.f32.xlu0 %v152
    %v154 = vpop.xlane.xlu0 %153
    %v155 = vsub.f32 %v135, %v154
    %v156 = vmul.f32 %v155, 1.442695
    %v157 = vpow.pop %v156
    %v158 = vsel %vm151, %v157, 0.0
    %159 = vadd.xlane.f32.xlu0 %v158
    %v160 = vpop.xlane.xlu0 %159
    %v161 = vrcp.pop %v160
    %v162 = vmul.f32 %v157, %v161
    %163 = vst.msk [vmem:[#allocation7] sm:$0x3] %vm151, %v162
    // Predicated region
    $region18: #{attn_forward.1} parent=1 // pred_check
      _
    $region19: #{attn_forward.1} parent=1 // pred_check_branch
      %165 = sbr.rel (0) target = $region21
    $region20: #{attn_forward.1} parent=1 // pred_region
      %167 = vsyncadd [#allocation4], 0
      %s169 = sshll.u32 [#allocation7], 4
      %s170 = int_to_ptr.vmem [resolvable:$true] %s169
      %s171 = sshll.u32 %s2, 4
      %s172 = int_to_ptr.hbm [resolvable:$true] %s171
      %174 = dma.vmem_to_hbm [thread:$0]  %s170, 32, %s172, [#allocation4]
    $region21: #{attn_forward.1} parent=1 // pred_fallthru
      _
    // Predicated region
    $region22: #{attn_forward.1} parent=1 // pred_check
      _
    $region23: #{attn_forward.1} parent=1 // pred_check_branch
      %176 = sbr.rel (0) target = $region25
    $region24: #{attn_forward.1} parent=1 // pred_region
      %178 = dma.done [#allocation4], 32
    $region25: #{attn_forward.1} parent=1 // pred_fallthru
      _
    %179 = vsyncpa [#allocation3], 1
    %180 = vsyncpa [#allocation6], 1
    %181 = vsyncpa [#allocation4], 1

</llo_original>
